<compile_context>
chip_gen: v6e
topology: v6e:2x2x1
jax: 0.10.0
libtpu: 0.0.40
codegen_flags: <defaults>
</compile_context>

<pallas_src>
import jax
import jax.numpy as jnp
from jax.experimental import pallas as pl
from jax.experimental.pallas import tpu as pltpu


# --------------------------------------------------------------------------
# Kernel bodies
# --------------------------------------------------------------------------
def _make_dma_concat_kernel(widths):
    """One HBM->HBM DMA per input into its column slab of the rank-2 output."""
    n_in = len(widths)
    offsets = []
    off = 0
    for w in widths:
        offsets.append(off)
        off += w

    def kernel(*refs):
        in_refs = refs[:n_in]          # rank-2 HBM refs: (lead, w_i)
        out_ref = refs[n_in]           # rank-2 HBM ref:  (lead, sum(w_i))
        sems = refs[n_in + 1]          # one DMA semaphore per input

        copies = []
        for i, (src, w, o) in enumerate(zip(in_refs, widths, offsets)):
            cp = pltpu.make_async_copy(
                src,
                out_ref.at[:, pl.ds(o, w)],
                sems.at[i],
            )
            cp.start()                 # issue now; all DMAs run concurrently
            copies.append(cp)
        for cp in copies:
            cp.wait()

    return kernel


def _make_vmem_concat_kernel(widths):
    """VMEM-staged copy: write each input slab into its columns of one tile."""
    n_in = len(widths)
    offsets = []
    off = 0
    for w in widths:
        offsets.append(off)
        off += w

    def kernel(*refs):
        in_refs = refs[:n_in]          # (tile_lead, w_i) VMEM tiles
        out_ref = refs[n_in]           # (tile_lead, sum(w_i)) VMEM tile
        for src, w, o in zip(in_refs, widths, offsets):
            out_ref[:, o:o + w] = src[...]   # static column slices

    return kernel


# --------------------------------------------------------------------------
# pallas_call wrappers for the two large-tensor paths
# --------------------------------------------------------------------------
def _dma_concat(xs2, widths, out2_shape, out_dtype):
    kernel = _make_dma_concat_kernel(tuple(widths))
    hbm_spec = pl.BlockSpec(memory_space=pl.ANY)   # leave arrays in HBM
    return pl.pallas_call(
        kernel,
        out_shape=jax.ShapeDtypeStruct(out2_shape, out_dtype),
        in_specs=[hbm_spec] * len(xs2),
        out_specs=hbm_spec,
        scratch_shapes=[pltpu.SemaphoreType.DMA((len(xs2),))],
    )(*xs2)


def _vmem_staged_concat(xs2, widths, out2_shape, out_dtype, itemsize):
    lead, total_w = out2_shape

    # Size the lead tile so (inputs + output) double-buffered fits comfortably
    # in VMEM on every generation (v7x: 64 MiB physical / 32 MiB scoped).
    tile_budget_bytes = 8 * 1024 * 1024          # per buffer set
    bytes_per_row = 2 * total_w * itemsize       # input slabs + output row
    tile_lead = tile_budget_bytes // max(bytes_per_row, 1)
    tile_lead = max(8, (tile_lead // 8) * 8)     # sublane-aligned
    if tile_lead >= lead:
        tile_lead = lead                         # single block == full dim

    grid = (pl.cdiv(lead, tile_lead),)
    in_specs = [
        pl.BlockSpec((tile_lead, w), lambda i: (i, 0)) for w in widths
    ]
    out_specs = pl.BlockSpec((tile_lead, total_w), lambda i: (i, 0))

    # Explicit VMEM limit: ~2x the double-buffered working set, capped sanely.
    working_set = 2 * tile_lead * bytes_per_row
    vmem_limit = int(min(100 * 1024 * 1024,
                         max(2 * working_set, 16 * 1024 * 1024)))

    kernel = _make_vmem_concat_kernel(tuple(widths))
    return pl.pallas_call(
        kernel,
        out_shape=jax.ShapeDtypeStruct(out2_shape, out_dtype),
        grid=grid,
        in_specs=in_specs,
        out_specs=out_specs,
        compiler_params=pltpu.CompilerParams(
            dimension_semantics=("parallel",),
            vmem_limit_bytes=vmem_limit,
        ),
    )(*xs2)


# --------------------------------------------------------------------------
# Public wrapper
# --------------------------------------------------------------------------
def concat_pallas(xs, dim=1, *, min_pallas_bytes=1 << 20, small_run_bytes=512):
    """Pallas equivalent of torch.cat(xs, dim) (default dim=1 == NCHW channels)."""
    xs = list(xs)
    if len(xs) == 0:
        raise ValueError("concat_pallas: expected a non-empty list of tensors")

    x0 = xs[0]
    rank = x0.ndim
    if rank == 0:
        raise ValueError("concat_pallas: zero-dim tensors cannot be concatenated")
    d = dim % rank

    # torch.cat-style type promotion.
    out_dtype = jnp.result_type(*[x.dtype for x in xs])
    itemsize = jnp.dtype(out_dtype).itemsize

    lead = 1
    for s in x0.shape[:d]:
        lead *= int(s)
    trail = 1
    for s in x0.shape[d + 1:]:
        trail *= int(s)

    slab_sizes = []
    for x in xs:
        assert x.shape[:d] == x0.shape[:d] and x.shape[d + 1:] == x0.shape[d + 1:], (
            "all input shapes must match except on the concat dim")
        slab_sizes.append(int(x.shape[d]))
    total = sum(slab_sizes)
    out_shape = x0.shape[:d] + (total,) + x0.shape[d + 1:]

    # Drop zero-sized slabs (torch.cat accepts them; they contribute nothing,
    # and a 0-length DMA is at best wasted descriptor issue).
    pairs = [(x, c) for x, c in zip(xs, slab_sizes) if c > 0]
    if not pairs:
        return jnp.zeros(out_shape, out_dtype)
    if len(pairs) == 1:
        return pairs[0][0].astype(out_dtype).reshape(out_shape)

    xs = [x.astype(out_dtype) for x, _ in pairs]
    slabs = [c for _, c in pairs]

    total_bytes = lead * total * trail * itemsize

    # Fast path: tiny concats are launch/DMA-issue dominated.
    if total_bytes < min_pallas_bytes:
        return jnp.concatenate(xs, axis=d)

    # Collapse to rank-2 views (contiguity-preserving reshape):
    #   inputs  (lead, c_i * trail), output (lead, total * trail).
    widths = [c * trail for c in slabs]
    xs2 = [x.reshape(lead, w) for x, w in zip(xs, widths)]
    out2_shape = (lead, total * trail)

    min_run_bytes = min(widths) * itemsize
    if lead > 1 and min_run_bytes < small_run_bytes:
        out2 = _vmem_staged_concat(xs2, widths, out2_shape, out_dtype, itemsize)
    else:
        out2 = _dma_concat(xs2, widths, out2_shape, out_dtype)

    return out2.reshape(out_shape)


class Concat:
    """Mirror of the PyTorch module: forward(x) -> torch.cat(x, self.d)."""

    def __init__(self, dimension=1):
        self.d = dimension

    def __call__(self, x):
        return concat_pallas(list(x), dim=self.d)


# --------------------------------------------------------------------------
# Self-test
# --------------------------------------------------------------------------
if __name__ == "__main__":
    key = jax.random.PRNGKey(0)
    k1, k2, k3, k4, k5 = jax.random.split(key, 5)

    ok = True

    # --- Case 1: small NCHW channel concat (fast jnp.concatenate path),
    #     including a zero-sized slab on the concat dim.
    x1 = jax.random.normal(k1, (2, 4, 16, 16), dtype=jnp.float32)
    x2 = jax.random.normal(k2, (2, 6, 16, 16), dtype=jnp.float32)
    x3 = jax.random.normal(k3, (2, 2, 16, 16), dtype=jnp.float32)
    x0 = jnp.zeros((2, 0, 16, 16), dtype=jnp.float32)

    module = Concat(dimension=1)
    out = jax.block_until_ready(module([x1, x0, x2, x3]))
    ref = jnp.concatenate([x1, x0, x2, x3], axis=1)
    ok &= out.shape == (2, 12, 16, 16)
    ok &= out.dtype == jnp.float32
    ok &= bool(jnp.array_equal(out, ref))

    # --- Case 2: force the pure HBM->HBM DMA Pallas path on the same inputs
    #     (per-lead run = 4..6 channels * 256 * 4 B >= 512 B -> DMA kernel).
    out_dma = jax.block_until_ready(
        concat_pallas([x1, x2, x3], dim=1, min_pallas_bytes=0))
    ref_dma = jnp.concatenate([x1, x2, x3], axis=1)
    ok &= bool(jnp.array_equal(out_dma, ref_dma))

    # --- Case 3: force the VMEM-staged Pallas path (last-dim concat ->
    #     per-lead run = 8 * 4 B = 32 B < 512 B).
    y1 = jax.random.normal(k4, (2, 4, 16, 8), dtype=jnp.float32)
    y2 = jax.random.normal(k5, (2, 4, 16, 8), dtype=jnp.float32)
    out_vm = jax.block_until_ready(
        concat_pallas([y1, y2], dim=-1, min_pallas_bytes=0))
    ref_vm = jnp.concatenate([y1, y2], axis=-1)
    ok &= out_vm.shape == (2, 4, 16, 16)
    ok &= bool(jnp.array_equal(out_vm, ref_vm))

    assert ok
    print("KERNEL_OK")
</pallas_src>

<mosaic_0001>
module attributes {stable_mosaic.version = 11 : i64} {
  func.func @kernel(%arg0: memref<2x1024xf32, #tpu.memory_space<any>>, %arg1: memref<2x1536xf32, #tpu.memory_space<any>>, %arg2: memref<2x512xf32, #tpu.memory_space<any>>, %arg3: memref<2x3072xf32, #tpu.memory_space<any>>, %arg4: memref<3x!tpu.dma_semaphore, #tpu.memory_space<semaphore_mem>>) attributes {dimension_semantics = [], scalar_prefetch = 0 : i64, scratch_operands = 1 : i64, tpu.core_type = #tpu.core_type<tc>} {
    %c0_i32 = arith.constant 0 : i32
    %c0_i32_0 = arith.constant 0 : i32
    %c0_i32_1 = arith.constant 0 : i32
    %0 = tpu.memref_slice %arg3[%c0_i32_0, %c0_i32_1] : memref<2x3072xf32, #tpu.memory_space<any>> -> memref<2x1024xf32, #tpu.memory_space<any>>
    %1 = tpu.memref_slice %arg4[%c0_i32] : memref<3x!tpu.dma_semaphore, #tpu.memory_space<semaphore_mem>> -> memref<1x!tpu.dma_semaphore, #tpu.memory_space<semaphore_mem>>
    %2 = tpu.memref_squeeze %1 : memref<1x!tpu.dma_semaphore, #tpu.memory_space<semaphore_mem>> -> memref<!tpu.dma_semaphore, #tpu.memory_space<semaphore_mem>>
    tpu.enqueue_dma source(%arg0 : memref<2x1024xf32, #tpu.memory_space<any>>) target(%0 : memref<2x1024xf32, #tpu.memory_space<any>>) target_semaphore(%2 : memref<!tpu.dma_semaphore, #tpu.memory_space<semaphore_mem>>)
    %c1_i32 = arith.constant 1 : i32
    %c0_i32_2 = arith.constant 0 : i32
    %c1024_i32 = arith.constant 1024 : i32
    %3 = tpu.memref_slice %arg3[%c0_i32_2, %c1024_i32] : memref<2x3072xf32, #tpu.memory_space<any>> -> memref<2x1536xf32, #tpu.memory_space<any>>
    %4 = tpu.memref_slice %arg4[%c1_i32] : memref<3x!tpu.dma_semaphore, #tpu.memory_space<semaphore_mem>> -> memref<1x!tpu.dma_semaphore, #tpu.memory_space<semaphore_mem>>
    %5 = tpu.memref_squeeze %4 : memref<1x!tpu.dma_semaphore, #tpu.memory_space<semaphore_mem>> -> memref<!tpu.dma_semaphore, #tpu.memory_space<semaphore_mem>>
    tpu.enqueue_dma source(%arg1 : memref<2x1536xf32, #tpu.memory_space<any>>) target(%3 : memref<2x1536xf32, #tpu.memory_space<any>>) target_semaphore(%5 : memref<!tpu.dma_semaphore, #tpu.memory_space<semaphore_mem>>)
    %c2_i32 = arith.constant 2 : i32
    %c0_i32_3 = arith.constant 0 : i32
    %c2560_i32 = arith.constant 2560 : i32
    %6 = tpu.memref_slice %arg3[%c0_i32_3, %c2560_i32] : memref<2x3072xf32, #tpu.memory_space<any>> -> memref<2x512xf32, #tpu.memory_space<any>>
    %7 = tpu.memref_slice %arg4[%c2_i32] : memref<3x!tpu.dma_semaphore, #tpu.memory_space<semaphore_mem>> -> memref<1x!tpu.dma_semaphore, #tpu.memory_space<semaphore_mem>>
    %8 = tpu.memref_squeeze %7 : memref<1x!tpu.dma_semaphore, #tpu.memory_space<semaphore_mem>> -> memref<!tpu.dma_semaphore, #tpu.memory_space<semaphore_mem>>
    tpu.enqueue_dma source(%arg2 : memref<2x512xf32, #tpu.memory_space<any>>) target(%6 : memref<2x512xf32, #tpu.memory_space<any>>) target_semaphore(%8 : memref<!tpu.dma_semaphore, #tpu.memory_space<semaphore_mem>>)
    %c0_i32_4 = arith.constant 0 : i32
    %c0_i32_5 = arith.constant 0 : i32
    %c0_i32_6 = arith.constant 0 : i32
    %9 = tpu.memref_slice %arg3[%c0_i32_5, %c0_i32_6] : memref<2x3072xf32, #tpu.memory_space<any>> -> memref<2x1024xf32, #tpu.memory_space<any>>
    %10 = tpu.memref_slice %arg4[%c0_i32_4] : memref<3x!tpu.dma_semaphore, #tpu.memory_space<semaphore_mem>> -> memref<1x!tpu.dma_semaphore, #tpu.memory_space<semaphore_mem>>
    %11 = tpu.memref_squeeze %10 : memref<1x!tpu.dma_semaphore, #tpu.memory_space<semaphore_mem>> -> memref<!tpu.dma_semaphore, #tpu.memory_space<semaphore_mem>>
    tpu.wait_dma2 semaphore(%11 : memref<!tpu.dma_semaphore, #tpu.memory_space<semaphore_mem>>) src(%arg0 : memref<2x1024xf32, #tpu.memory_space<any>>) dst(%9 : memref<2x1024xf32, #tpu.memory_space<any>>)
    %c1_i32_7 = arith.constant 1 : i32
    %c0_i32_8 = arith.constant 0 : i32
    %c1024_i32_9 = arith.constant 1024 : i32
    %12 = tpu.memref_slice %arg3[%c0_i32_8, %c1024_i32_9] : memref<2x3072xf32, #tpu.memory_space<any>> -> memref<2x1536xf32, #tpu.memory_space<any>>
    %13 = tpu.memref_slice %arg4[%c1_i32_7] : memref<3x!tpu.dma_semaphore, #tpu.memory_space<semaphore_mem>> -> memref<1x!tpu.dma_semaphore, #tpu.memory_space<semaphore_mem>>
    %14 = tpu.memref_squeeze %13 : memref<1x!tpu.dma_semaphore, #tpu.memory_space<semaphore_mem>> -> memref<!tpu.dma_semaphore, #tpu.memory_space<semaphore_mem>>
    tpu.wait_dma2 semaphore(%14 : memref<!tpu.dma_semaphore, #tpu.memory_space<semaphore_mem>>) src(%arg1 : memref<2x1536xf32, #tpu.memory_space<any>>) dst(%12 : memref<2x1536xf32, #tpu.memory_space<any>>)
    %c2_i32_10 = arith.constant 2 : i32
    %c0_i32_11 = arith.constant 0 : i32
    %c2560_i32_12 = arith.constant 2560 : i32
    %15 = tpu.memref_slice %arg3[%c0_i32_11, %c2560_i32_12] : memref<2x3072xf32, #tpu.memory_space<any>> -> memref<2x512xf32, #tpu.memory_space<any>>
    %16 = tpu.memref_slice %arg4[%c2_i32_10] : memref<3x!tpu.dma_semaphore, #tpu.memory_space<semaphore_mem>> -> memref<1x!tpu.dma_semaphore, #tpu.memory_space<semaphore_mem>>
    %17 = tpu.memref_squeeze %16 : memref<1x!tpu.dma_semaphore, #tpu.memory_space<semaphore_mem>> -> memref<!tpu.dma_semaphore, #tpu.memory_space<semaphore_mem>>
    tpu.wait_dma2 semaphore(%17 : memref<!tpu.dma_semaphore, #tpu.memory_space<semaphore_mem>>) src(%arg2 : memref<2x512xf32, #tpu.memory_space<any>>) dst(%15 : memref<2x512xf32, #tpu.memory_space<any>>)
    return
  }
}

</mosaic_0001>

<llo_original>
// kernel: tpu_custom_call.1
$region0: #{tpu_custom_call.1}
  #allocation0 [shape = 'u32[]', space=smem, size = 0x4, offset = 0x4, fixed_abs, tag = 'smem constant byte address 0x4 - core index']
  #allocation1 [shape = 'u32[144,128]{1,0:T(1,128)}', space=vmem, size = 0x12000, scoped, tag = 'internal scratch']
  #allocation2 [shape = 's32[3]{0}', space=sflag, size = 0xc, scoped, tag = 'scratch operand']
  #allocation3 [shape = 's32[]', space=sflag, size = 0x4, offset = 0, fixed_abs, tag = 'sflag constant byte address 0x0 - dummy sync flag']
  #allocation4 [shape = 'u32[0]{0}', space=smem, size = 0, offset = 0, fixed_abs, tag = 'smem constant byte address 0x0 - null']
  #allocation5 [shape = 's32[]', space=sflag, size = 0x4, offset = 0, fixed_abs, tag = 'sflag constant byte address 0x0 - dummy sync flag']
  #allocation6 [shape = 'u32[0]{0}', space=smem, size = 0, offset = 0, fixed_abs, tag = 'smem constant byte address 0x0 - null']
  #allocation7 [shape = 's32[]', space=sflag, size = 0x4, offset = 0, fixed_abs, tag = 'sflag constant byte address 0x0 - dummy sync flag']
  #allocation8 [shape = 'u32[0]{0}', space=smem, size = 0, offset = 0, fixed_abs, tag = 'smem constant byte address 0x0 - null']
  %s0 = inlined_call_operand.hbm [shape: f32[2,1024], index: 0, kind: input, shape index: {}]
  %s1 = inlined_call_operand.hbm [shape: f32[2,1536], index: 1, kind: input, shape index: {}]
  %s2 = inlined_call_operand.hbm [shape: f32[2,512], index: 2, kind: input, shape index: {}]
  %s3 = inlined_call_operand.hbm [shape: f32[2,3072], index: 3, kind: output, shape index: {}]
  %s4 = sld [smem:[#allocation0]]
  $region2: #{tpu_custom_call.1} parent=0
    _
  %s6 = ssub.s32 1, %s4
  %s7 = scalar_select 0, %s6, %s4
  %s9 = sshll.u32 1, 14
  %s10 = sxor.u32 4294967295, %s9
  %14 = dma.general %s0, 256, %s3, [#allocation2], 131072, [#allocation4], 0, 0
  %s15 = scalar_lea.hbm %s3, 256
  %s16 = scalar_lea.sflag [#allocation2], 1
  %s18 = sshll.u32 1, 14
  %s19 = sxor.u32 4294967295, %s18
  %23 = dma.general %s1, 384, %s15, %s16, 131072, [#allocation6], 0, 0
  %s24 = scalar_lea.hbm %s3, 640
  %s25 = scalar_lea.sflag [#allocation2], 2
  %s27 = sshll.u32 1, 14
  %s28 = sxor.u32 4294967295, %s27
  %32 = dma.general %s2, 128, %s24, %s25, 131072, [#allocation8], 0, 0
  %s33 = smul.u32 2, 1
  %s34 = smul.u32 %s33, 8
  %s35 = sshll.u32 %s34, 4
  %36 = dma.done [#allocation2], %s35
  %s37 = smul.u32 %s33, 12
  %s38 = sshll.u32 %s37, 4
  %39 = dma.done %s16, %s38
  %s40 = smul.u32 %s33, 4
  %s41 = sshll.u32 %s40, 4
  %42 = dma.done %s25, %s41
  %43 = vsyncmov [#allocation2]
  %s44 = vpop.sfrf %43
  %p45 = scmp.eq.s32.totalorder %s44, 0
  %p46 = pneg %p45
  %48 = shalt.err (%p46)
  %s49 = scalar_lea.sflag [#allocation2], 1
  %50 = vsyncmov %s49
  %s51 = vpop.sfrf %50
  %p52 = scmp.eq.s32.totalorder %s51, 0
  %p53 = pneg %p52
  %55 = shalt.err (%p53)
  %s56 = scalar_lea.sflag [#allocation2], 2
  %57 = vsyncmov %s56
  %s58 = vpop.sfrf %57
  %p59 = scmp.eq.s32.totalorder %s58, 0
  %p60 = pneg %p59
  %62 = shalt.err (%p60)

</llo_original>
